<compile_context>
chip_gen: v7x
topology: tpu7x:2x2x1
jax: 0.10.0
libtpu: 0.0.40
codegen_flags: <defaults>
</compile_context>

<pallas_src>
import functools

import jax
import jax.numpy as jnp
from jax.experimental import pallas as pl
from jax.experimental.pallas import tpu as pltpu

GAMMA = 1.5
ALPHA = 0.25
LANES = 128
NUM_CORES = 2  # leading "parallel" grid axis; 2x on v7x megacore, harmless on 1-TC chips


def _qfocal_kernel(pred_ref, true_ref, out_ref, *, gamma, alpha,
                   rows, tile_rows, tiles_per_core):
    c = pl.program_id(0)
    i = pl.program_id(1)

    # One (8,128) partial-sum slab per core; it is resident across the
    # "arbitrary" axis, so it doubles as the accumulator.
    @pl.when(i == 0)
    def _():
        out_ref[...] = jnp.zeros_like(out_ref)

    x = pred_ref[...].astype(jnp.float32)
    z = true_ref[...].astype(jnp.float32)

    # Tail mask: this (possibly edge / fully out-of-range) tile logically
    # covers rows [tile_idx*tile_rows, tile_idx*tile_rows + tile_rows).
    tile_idx = c * tiles_per_core + i
    row0 = tile_idx * tile_rows
    local_row = jax.lax.broadcasted_iota(jnp.int32, x.shape, 0)
    valid = (row0 + local_row) < rows
    # Mask inputs first so OOB garbage in the padded edge block can never
    # produce NaN/Inf that would survive the output mask.
    x = jnp.where(valid, x, 0.0)
    z = jnp.where(valid, z, 0.0)

    # Numerically stable BCEWithLogits: max(x,0) - x*z + log(1 + exp(-|x|)).
    e = jnp.exp(-jnp.abs(x))                       # reused for the sigmoid too
    bce = jnp.maximum(x, 0.0) - x * z + jnp.log1p(e)

    # sigmoid(x) reusing e = exp(-|x|): saves one exp per element on the EUP.
    p = jnp.where(x >= 0, 1.0, e) / (1.0 + e)

    alpha_factor = z * alpha + (1.0 - z) * (1.0 - alpha)
    m = jnp.abs(z - p)
    if gamma == 1.5:
        modulating_factor = m * jnp.sqrt(m)        # avoids exp(gamma*log(m)) pow
    elif gamma == 2.0:
        modulating_factor = m * m
    else:
        modulating_factor = m ** gamma             # generic fallback

    loss = jnp.where(valid, bce * alpha_factor * modulating_factor, 0.0)

    # Fold tile_rows -> 8 sublanes with plain VPU adds; the single cross-lane
    # reduce happens once, in the wrapper, on a tiny (NUM_CORES,8,128) array.
    out_ref[...] += loss.reshape(-1, 8, LANES).sum(axis=0)


def qfocal_loss(pred, true, gamma=GAMMA, alpha=ALPHA, tile_rows=1024):
    """QFocalLoss(BCEWithLogitsLoss(reduction='mean'))(pred, true) -> scalar."""
    assert pred.shape == true.shape
    total = pred.size
    assert total % LANES == 0, "demo wrapper requires total elements % 128 == 0"
    rows = total // LANES

    # Free (metadata-only) reshape to a lane-dense [rows, 128] slab; no dtype
    # upcast and no padding concatenate in the wrapper.
    p2 = jnp.reshape(pred, (rows, LANES))
    t2 = jnp.reshape(true, (rows, LANES))

    # Large tiles: (1024,128) f32 = 512 KiB/input/buffer (~2 MiB total with
    # double buffering) -> comfortably inside VMEM on v5e/v6e/v7x. Clamp for
    # small inputs, keep a multiple of 8 sublanes (use >=16 if feeding bf16).
    tile_rows = max(8, min(tile_rows, ((rows + 7) // 8) * 8))
    n_tiles = pl.cdiv(rows, tile_rows)
    tiles_per_core = pl.cdiv(n_tiles, NUM_CORES)

    def in_map(c, i):
        # Clamp so a fully out-of-range tile (odd split across cores) just
        # re-reads the last valid tile; the in-kernel row mask zeroes it.
        return (jnp.minimum(c * tiles_per_core + i, n_tiles - 1), 0)

    kernel = functools.partial(
        _qfocal_kernel, gamma=gamma, alpha=alpha,
        rows=rows, tile_rows=tile_rows, tiles_per_core=tiles_per_core)

    partial = pl.pallas_call(
        kernel,
        out_shape=jax.ShapeDtypeStruct((NUM_CORES, 8, LANES), jnp.float32),
        grid_spec=pltpu.PrefetchScalarGridSpec(
            num_scalar_prefetch=0,
            grid=(NUM_CORES, tiles_per_core),
            in_specs=[
                pl.BlockSpec((tile_rows, LANES), in_map),
                pl.BlockSpec((tile_rows, LANES), in_map),
            ],
            out_specs=pl.BlockSpec((None, 8, LANES), lambda c, i: (c, 0, 0)),
        ),
        compiler_params=pltpu.CompilerParams(
            dimension_semantics=("parallel", "arbitrary")),
    )(p2, t2)

    # Final tiny reduce + mean outside the kernel (2*8*128 floats).
    return jnp.sum(partial) / total


def qfocal_loss_ref(pred, true, gamma=GAMMA, alpha=ALPHA):
    x = pred.astype(jnp.float32)
    z = true.astype(jnp.float32)
    bce = jnp.maximum(x, 0.0) - x * z + jnp.log1p(jnp.exp(-jnp.abs(x)))
    p = jax.nn.sigmoid(x)
    af = z * alpha + (1.0 - z) * (1.0 - alpha)
    mf = jnp.abs(z - p) ** gamma
    return jnp.mean(bce * af * mf)


if __name__ == "__main__":
    key = jax.random.PRNGKey(0)
    k1, k2 = jax.random.split(key)
    # NCHW like the PyTorch module would see (e.g. objectness/cls logits)
    pred = jax.random.normal(k1, (2, 4, 16, 16), dtype=jnp.float32)
    true = (jax.random.uniform(k2, (2, 4, 16, 16)) > 0.7).astype(jnp.float32)

    out = qfocal_loss(pred, true)
    out = jax.block_until_ready(out)

    ref = qfocal_loss_ref(pred, true)
    assert jnp.allclose(out, ref, rtol=1e-4, atol=1e-6), (out, ref)
    print("KERNEL_OK")
</pallas_src>

<mosaic_0001>
module attributes {stable_mosaic.version = 11 : i64} {
  func.func @_qfocal_kernel(%arg0: i32, %arg1: i32, %arg2: memref<16x128xf32, #tpu.memory_space<vmem>>, %arg3: memref<16x128xf32, #tpu.memory_space<vmem>>, %arg4: memref<1x8x128xf32, #tpu.memory_space<vmem>>) attributes {dimension_semantics = [#tpu.dimension_semantics<parallel>, #tpu.dimension_semantics<arbitrary>], iteration_bounds = array<i64: 2, 1>, scalar_prefetch = 0 : i64, scratch_operands = 0 : i64, tpu.core_type = #tpu.core_type<tc>, window_params = [{transform_indices = @transform_0, window_bounds = array<i64: 16, 128>}, {transform_indices = @transform_1, window_bounds = array<i64: 16, 128>}, {transform_indices = @transform_2, window_bounds = array<i64: 1, 8, 128>}]} {
    %c0_i32 = arith.constant 0 : i32
    %0 = arith.cmpi eq, %arg1, %c0_i32 : i32
    %1 = arith.extui %0 : i1 to i32
    %c0_i32_0 = arith.constant 0 : i32
    %2 = arith.cmpi ne, %1, %c0_i32_0 : i32
    scf.if %2 {
      %cst_22 = arith.constant 0.000000e+00 : f32
      %57 = vector.broadcast %cst_22 : f32 to vector<8x128xf32>
      %c0_23 = arith.constant 0 : index
      %c0_24 = arith.constant 0 : index
      %c0_25 = arith.constant 0 : index
      %58 = vector.load %arg4[%c0_23, %c0_24, %c0_25] : memref<1x8x128xf32, #tpu.memory_space<vmem>>, vector<1x8x128xf32>
      %59 = vector.shape_cast %58 : vector<1x8x128xf32> to vector<8x128xf32>
      %60 = vector.shape_cast %57 : vector<8x128xf32> to vector<1x8x128xf32>
      tpu.vector_store %arg4[%c0_23, %c0_24, %c0_25], %60 {strides = array<i32>} : memref<1x8x128xf32, #tpu.memory_space<vmem>>, vector<1x8x128xf32>,
    } else {
    }
    %c0 = arith.constant 0 : index
    %c0_1 = arith.constant 0 : index
    %3 = vector.load %arg2[%c0, %c0_1] : memref<16x128xf32, #tpu.memory_space<vmem>>, vector<16x128xf32>
    %c0_2 = arith.constant 0 : index
    %c0_3 = arith.constant 0 : index
    %4 = vector.load %arg3[%c0_2, %c0_3] : memref<16x128xf32, #tpu.memory_space<vmem>>, vector<16x128xf32>
    %c1_i32 = arith.constant 1 : i32
    %5 = arith.muli %arg0, %c1_i32 : i32
    %6 = arith.addi %5, %arg1 : i32
    %c16_i32 = arith.constant 16 : i32
    %7 = arith.muli %6, %c16_i32 : i32
    %8 = tpu.iota {dimensions = array<i32: 0>} : vector<16x128xi32>
    %9 = vector.broadcast %7 : i32 to vector<16x128xi32>
    %10 = arith.addi %9, %8 : vector<16x128xi32>
    %c16_i32_4 = arith.constant 16 : i32
    %11 = vector.broadcast %c16_i32_4 : i32 to vector<16x128xi32>
    %12 = arith.cmpi slt, %10, %11 : vector<16x128xi32>
    %cst = arith.constant 0.000000e+00 : f32
    %13 = vector.broadcast %cst : f32 to vector<16x128xf32>
    %14 = arith.select %12, %3, %13 : vector<16x128xi1>, vector<16x128xf32>
    %cst_5 = arith.constant 0.000000e+00 : f32
    %15 = vector.broadcast %cst_5 : f32 to vector<16x128xf32>
    %16 = arith.select %12, %4, %15 : vector<16x128xi1>, vector<16x128xf32>
    %17 = math.absf %14 : vector<16x128xf32>
    %cst_6 = arith.constant 0.000000e+00 : f32
    %18 = vector.broadcast %cst_6 : f32 to vector<16x128xf32>
    %19 = arith.subf %18, %17 : vector<16x128xf32>
    %20 = math.exp %19 : vector<16x128xf32>
    %cst_7 = arith.constant 0.000000e+00 : f32
    %21 = vector.broadcast %cst_7 : f32 to vector<16x128xf32>
    %22 = arith.maximumf %14, %21 : vector<16x128xf32>
    %23 = arith.mulf %14, %16 : vector<16x128xf32>
    %24 = arith.subf %22, %23 : vector<16x128xf32>
    %25 = math.log1p %20 : vector<16x128xf32>
    %26 = arith.addf %24, %25 : vector<16x128xf32>
    %cst_8 = arith.constant 0.000000e+00 : f32
    %27 = vector.broadcast %cst_8 : f32 to vector<16x128xf32>
    %28 = arith.cmpf oge, %14, %27 : vector<16x128xf32>
    %cst_9 = arith.constant 1.000000e+00 : f32
    %29 = vector.broadcast %cst_9 : f32 to vector<16x128xf32>
    %30 = arith.select %28, %29, %20 : vector<16x128xi1>, vector<16x128xf32>
    %cst_10 = arith.constant 1.000000e+00 : f32
    %31 = vector.broadcast %cst_10 : f32 to vector<16x128xf32>
    %32 = arith.addf %31, %20 : vector<16x128xf32>
    %33 = arith.divf %30, %32 : vector<16x128xf32>
    %cst_11 = arith.constant 2.500000e-01 : f32
    %34 = vector.broadcast %cst_11 : f32 to vector<16x128xf32>
    %35 = arith.mulf %16, %34 : vector<16x128xf32>
    %cst_12 = arith.constant 1.000000e+00 : f32
    %36 = vector.broadcast %cst_12 : f32 to vector<16x128xf32>
    %37 = arith.subf %36, %16 : vector<16x128xf32>
    %cst_13 = arith.constant 7.500000e-01 : f32
    %38 = vector.broadcast %cst_13 : f32 to vector<16x128xf32>
    %39 = arith.mulf %37, %38 : vector<16x128xf32>
    %40 = arith.addf %35, %39 : vector<16x128xf32>
    %41 = arith.subf %16, %33 : vector<16x128xf32>
    %42 = math.absf %41 : vector<16x128xf32>
    %43 = math.sqrt %42 : vector<16x128xf32>
    %44 = arith.mulf %42, %43 : vector<16x128xf32>
    %45 = arith.mulf %26, %40 : vector<16x128xf32>
    %46 = arith.mulf %45, %44 : vector<16x128xf32>
    %cst_14 = arith.constant 0.000000e+00 : f32
    %47 = vector.broadcast %cst_14 : f32 to vector<16x128xf32>
    %48 = arith.select %12, %46, %47 : vector<16x128xi1>, vector<16x128xf32>
    %c0_15 = arith.constant 0 : index
    %c0_16 = arith.constant 0 : index
    %c0_17 = arith.constant 0 : index
    %49 = vector.load %arg4[%c0_15, %c0_16, %c0_17] : memref<1x8x128xf32, #tpu.memory_space<vmem>>, vector<1x8x128xf32>
    %50 = vector.shape_cast %49 : vector<1x8x128xf32> to vector<8x128xf32>
    %51 = vector.shape_cast %48 : vector<16x128xf32> to vector<2x8x128xf32>
    %cst_18 = arith.constant dense<0.000000e+00> : vector<8x128xf32>
    %52 = vector.multi_reduction <add>, %51, %cst_18 [0] : vector<2x8x128xf32> to vector<8x128xf32>
    %53 = arith.addf %50, %52 : vector<8x128xf32>
    %c0_19 = arith.constant 0 : index
    %c0_20 = arith.constant 0 : index
    %c0_21 = arith.constant 0 : index
    %54 = vector.load %arg4[%c0_19, %c0_20, %c0_21] : memref<1x8x128xf32, #tpu.memory_space<vmem>>, vector<1x8x128xf32>
    %55 = vector.shape_cast %54 : vector<1x8x128xf32> to vector<8x128xf32>
    %56 = vector.shape_cast %53 : vector<8x128xf32> to vector<1x8x128xf32>
    tpu.vector_store %arg4[%c0_19, %c0_20, %c0_21], %56 {strides = array<i32>} : memref<1x8x128xf32, #tpu.memory_space<vmem>>, vector<1x8x128xf32>,
    return
  }
  func.func @transform_0(%arg0: i32, %arg1: i32) -> (i32, i32) {
    %c1_i32 = arith.constant 1 : i32
    %0 = arith.muli %arg0, %c1_i32 : i32
    %1 = arith.addi %0, %arg1 : i32
    %c0_i32 = arith.constant 0 : i32
    %2 = arith.minsi %1, %c0_i32 : i32
    %c0_i32_0 = arith.constant 0 : i32
    %c0_i32_1 = arith.constant 0 : i32
    return %2, %c0_i32_0 : i32, i32
  }
  func.func @transform_1(%arg0: i32, %arg1: i32) -> (i32, i32) {
    %c1_i32 = arith.constant 1 : i32
    %0 = arith.muli %arg0, %c1_i32 : i32
    %1 = arith.addi %0, %arg1 : i32
    %c0_i32 = arith.constant 0 : i32
    %2 = arith.minsi %1, %c0_i32 : i32
    %c0_i32_0 = arith.constant 0 : i32
    %c0_i32_1 = arith.constant 0 : i32
    return %2, %c0_i32_0 : i32, i32
  }
  func.func @transform_2(%arg0: i32, %arg1: i32) -> (i32, i32, i32) {
    %c0_i32 = arith.constant 0 : i32
    %c0_i32_0 = arith.constant 0 : i32
    %c0_i32_1 = arith.constant 0 : i32
    return %arg0, %c0_i32, %c0_i32_0 : i32, i32, i32
  }
}

</mosaic_0001>

<llo_original>
// kernel: tpu_custom_call.1
$region0: #{tpu_custom_call.1}
  #allocation0 [shape = 'u32[]', space=smem, size = 0x4, offset = 0x4, fixed_abs, tag = 'smem constant byte address 0x4 - core index']
  #allocation1 [shape = 'u32[144,128]{1,0:T(1,128)}', space=vmem, size = 0x12000, scoped, tag = 'internal scratch']
  %s0 = inlined_call_operand.hbm [shape: f32[16,128], index: 0, kind: input, shape index: {}]
  %s1 = inlined_call_operand.hbm [shape: f32[16,128], index: 1, kind: input, shape index: {}]
  %s2 = inlined_call_operand.hbm [shape: f32[2,8,128], index: 2, kind: output, shape index: {}]
  %s3 = sld [smem:[#allocation0]]
  $region53: #{tpu_custom_call.1} parent=0
    _
  %s5 = ssub.s32 1, %s3
  %s6 = scalar_select 0, %s5, %s3
  $region1: #{tpu_custom_call.1} parent=0
    #allocation2 [shape = 'u8[16384]{0}', space=vmem, size = 0x4000, scoped, tag = 'input window, operand 0']
    #allocation3 [shape = 's32[2]{0}', space=sflag, size = 0x8, scoped, tag = 'scoped memory for tpu_custom_call.1']
    #allocation4 [shape = 's32[2]{0}', space=sflag, size = 0x8, scoped, tag = 'scoped memory for tpu_custom_call.1']
    #allocation5 [shape = 'u8[16384]{0}', space=vmem, size = 0x4000, scoped, tag = 'input window, operand 1']
    #allocation6 [shape = 's32[2]{0}', space=sflag, size = 0x8, scoped, tag = 'scoped memory for tpu_custom_call.1']
    #allocation7 [shape = 'u8[8192]{0}', space=vmem, size = 0x2000, scoped, tag = 'output window, operand 0']
    %7 = vsyncpa [#allocation3], 0
    %s8 = scalar_lea.sflag [#allocation3], 1
    %9 = vsyncpa %s8, 0
    %10 = vsyncpa [#allocation6], 0
    %s11 = scalar_lea.sflag [#allocation6], 1
    %12 = vsyncpa %s11, 0
    %13 = vsyncpa [#allocation4], 0
    %s14 = scalar_lea.sflag [#allocation4], 1
    %15 = vsyncpa %s14, 0
    loop: start=0, step=1, limit=4
    $region2: #{tpu_custom_call.1} parent=1 // loop_pre_header
      _
    $region3: #{tpu_custom_call.1} parent=1 // loop_header
      %s17 = sphi 0, %s21
      %p18 = scmp.ge.s32.totalorder %s17, 4
      %s24 = sphi 0, %s36
      %s25 = sphi 0, %s32
      %s26 = sphi 0, %s24
      %s27 = sphi 0, %s25
      %s28 = sphi 0, %s26
      %s29 = sphi 0, %s27
      %s45 = sphi 0, %s47
      %s48 = sphi 0, %s45
      %s49 = sphi 0, %s48
      %s65 = sphi 0, %s49
      %s77 = sphi 0, %s79
      %s80 = sphi 0, %s77
      %s81 = sphi 0, %s80
      %s97 = sphi 0, %s81
      %s103 = sphi 0, %s105
      %s106 = sphi 0, %s103
      %s107 = sphi 0, %s106
      %s123 = sphi 0, %s107
    $region4: #{tpu_custom_call.1} parent=1 // loop_header_branch
      %20 = sbr.rel (%p18) target = $region8
    $region5: #{tpu_custom_call.1} parent=1 // loop_body
      %s22 = ssub.s32 %s17, 1
      %s23 = ssub.s32 %s17, 2
      %s30 = sadd.s32 1, %s25
      %p31 = scmp.ge.s32.totalorder %s30, 1
      %s32 = scalar_select %p31, 0, %s30
      %s33 = sadd.s32 1, %s24
      %s34 = scalar_select %p31, %s33, %s24
      %p35 = scmp.ge.s32.totalorder %s34, 2
      %s36 = scalar_select %p35, 0, %s34
      %s37 = sadd.s32 %s24, %s25
      %p38 = scmp.lt.s32.totalorder %s37, 0
      %s39 = scalar_select %p38, %s37, 0
      %s40 = sadd.s32 %s36, %s32
      %p41 = scmp.lt.s32.totalorder %s40, 0
      %s42 = scalar_select %p41, %s40, 0
      %s43 = ssub.s32 %s39, %s42
      %p44 = scmp.eq.s32.totalorder %s43, 0
      %s46 = sadd.s32 %s45, 1
      %s47 = scalar_select %p44, %s45, %s46
      %p50 = pneg %p44
      %p51 = scmp.eq.s32.totalorder %s17, 1
      %p52 = por %p50, %p51
      %p53 = scmp.ne.s32.totalorder %s45, %s48
      %p54 = scmp.eq.s32.totalorder %s17, 0
      %p55 = por %p53, %p54
      %p56 = scmp.ne.s32.totalorder %s45, %s48
      %p57 = scmp.eq.s32.totalorder %s22, 1
      %p58 = por %p56, %p57
      %p59 = scmp.ne.s32.totalorder %s48, %s49
      %p60 = scmp.eq.s32.totalorder %s22, 0
      %p61 = por %p59, %p60
      %p62 = scmp.ne.s32.totalorder %s48, %s49
      %p63 = scmp.eq.s32.totalorder %s23, 1
      %p64 = por %p62, %p63
      %p66 = scmp.ne.s32.totalorder %s49, %s65
      %p67 = scmp.eq.s32.totalorder %s23, 0
      %p68 = por %p66, %p67
      %s69 = sadd.s32 %s24, %s25
      %p70 = scmp.lt.s32.totalorder %s69, 0
      %s71 = scalar_select %p70, %s69, 0
      %s72 = sadd.s32 %s36, %s32
      %p73 = scmp.lt.s32.totalorder %s72, 0
      %s74 = scalar_select %p73, %s72, 0
      %s75 = ssub.s32 %s71, %s74
      %p76 = scmp.eq.s32.totalorder %s75, 0
      %s78 = sadd.s32 %s77, 1
      %s79 = scalar_select %p76, %s77, %s78
      %p82 = pneg %p76
      %p83 = scmp.eq.s32.totalorder %s17, 1
      %p84 = por %p82, %p83
      %p85 = scmp.ne.s32.totalorder %s77, %s80
      %p86 = scmp.eq.s32.totalorder %s17, 0
      %p87 = por %p85, %p86
      %p88 = scmp.ne.s32.totalorder %s77, %s80
      %p89 = scmp.eq.s32.totalorder %s22, 1
      %p90 = por %p88, %p89
      %p91 = scmp.ne.s32.totalorder %s80, %s81
      %p92 = scmp.eq.s32.totalorder %s22, 0
      %p93 = por %p91, %p92
      %p94 = scmp.ne.s32.totalorder %s80, %s81
      %p95 = scmp.eq.s32.totalorder %s23, 1
      %p96 = por %p94, %p95
      %p98 = scmp.ne.s32.totalorder %s81, %s97
      %p99 = scmp.eq.s32.totalorder %s23, 0
      %p100 = por %p98, %p99
      %s101 = ssub.s32 %s24, %s36
      %p102 = scmp.eq.s32.totalorder %s101, 0
      %s104 = sadd.s32 %s103, 1
      %s105 = scalar_select %p102, %s103, %s104
      %p108 = pneg %p102
      %p109 = scmp.eq.s32.totalorder %s17, 1
      %p110 = por %p108, %p109
      %p111 = scmp.ne.s32.totalorder %s103, %s106
      %p112 = scmp.eq.s32.totalorder %s17, 0
      %p113 = por %p111, %p112
      %p114 = scmp.ne.s32.totalorder %s103, %s106
      %p115 = scmp.eq.s32.totalorder %s22, 1
      %p116 = por %p114, %p115
      %p117 = scmp.ne.s32.totalorder %s106, %s107
      %p118 = scmp.eq.s32.totalorder %s22, 0
      %p119 = por %p117, %p118
      %p120 = scmp.ne.s32.totalorder %s106, %s107
      %p121 = scmp.eq.s32.totalorder %s23, 1
      %p122 = por %p120, %p121
      %p124 = scmp.ne.s32.totalorder %s107, %s123
      %p125 = scmp.eq.s32.totalorder %s23, 0
      %p126 = por %p124, %p125
      %p127 = scmp.le.s32.totalorder 1, %s17
      %p128 = scmp.lt.s32.totalorder %s17, 3
      %p129 = pnand %p127, %p128
      %p130 = pneg %p129
      // Predicated region
      $region9: #{tpu_custom_call.1} parent=5 // pred_check
        _
      $region10: #{tpu_custom_call.1} parent=5 // pred_check_branch
        %132 = sbr.rel (%p129) target = $region12
      $region11: #{tpu_custom_call.1} parent=5 // pred_region
        %s133 = ssub.s32 %s17, 1
      $region12: #{tpu_custom_call.1} parent=5 // pred_fallthru
        _
      %p134 = scmp.lt.s32.totalorder %s17, 2
      // Predicated region
      $region13: #{tpu_custom_call.1} parent=5 // pred_check
        %p135 = pneg %p134
      $region14: #{tpu_custom_call.1} parent=5 // pred_check_branch
        %137 = sbr.rel (%p135) target = $region16
      $region15: #{tpu_custom_call.1} parent=5 // pred_region
        // Predicated region
        $region17: #{tpu_custom_call.1} parent=15 // pred_check
          %p138 = pneg %p55
        $region18: #{tpu_custom_call.1} parent=15 // pred_check_branch
          %140 = sbr.rel (%p138) target = $region20
        $region19: #{tpu_custom_call.1} parent=15 // pred_region
          %s141 = sand.u32 %s45, 1
          %s142 = scalar_lea.sflag [#allocation3], %s141
          %s143 = sand.u32 %s45, 1
          %s144 = smul.addr %s143, 16
          %s145 = scalar_lea.vmem [#allocation2], %s144
          %s146 = sadd.s32 %s24, %s25
          %p147 = scmp.lt.s32.totalorder %s146, 0
          %s148 = scalar_select %p147, %s146, 0
          %s149 = smul.u32 2, %s148
          %s151 = ssub.s32 256, 256
          %152 = vsyncadd %s142, %s151
          %s153 = smul.addr %s149, 128
          %s154 = scalar_lea.hbm %s0, %s153
          %s155 = sshll.u32 %s145, 4
          %s156 = int_to_ptr.vmem [resolvable:$true] %s155
          %161 = dma.hbm_to_vmem [thread:$0]  %s154, 256, %s156, %s142, 128, 128, 8
        $region20: #{tpu_custom_call.1} parent=15 // pred_fallthru
          _
        // Predicated region
        $region21: #{tpu_custom_call.1} parent=15 // pred_check
          %p162 = pneg %p87
        $region22: #{tpu_custom_call.1} parent=15 // pred_check_branch
          %164 = sbr.rel (%p162) target = $region24
        $region23: #{tpu_custom_call.1} parent=15 // pred_region
          %s165 = sand.u32 %s77, 1
          %s166 = scalar_lea.sflag [#allocation6], %s165
          %s167 = sand.u32 %s77, 1
          %s168 = smul.addr %s167, 16
          %s169 = scalar_lea.vmem [#allocation5], %s168
          %s170 = sadd.s32 %s24, %s25
          %p171 = scmp.lt.s32.totalorder %s170, 0
          %s172 = scalar_select %p171, %s170, 0
          %s173 = smul.u32 2, %s172
          %s175 = ssub.s32 256, 256
          %176 = vsyncadd %s166, %s175
          %s177 = smul.addr %s173, 128
          %s178 = scalar_lea.hbm %s1, %s177
          %s179 = sshll.u32 %s169, 4
          %s180 = int_to_ptr.vmem [resolvable:$true] %s179
          %185 = dma.hbm_to_vmem [thread:$0]  %s178, 256, %s180, %s166, 128, 128, 8
        $region24: #{tpu_custom_call.1} parent=15 // pred_fallthru
          _
      $region16: #{tpu_custom_call.1} parent=5 // pred_fallthru
        _
      %p186 = scmp.le.s32.totalorder 1, %s17
      %p187 = scmp.lt.s32.totalorder %s17, 3
      %p188 = pnand %p186, %p187
      %p189 = pneg %p188
      // Predicated region
      $region25: #{tpu_custom_call.1} parent=5 // pred_check
        _
      $region26: #{tpu_custom_call.1} parent=5 // pred_check_branch
        %191 = sbr.rel (%p188) target = $region28
      $region27: #{tpu_custom_call.1} parent=5 // pred_region
        %s192 = ssub.s32 %s17, 1
        %s193 = sand.u32 %s48, 1
        %s194 = scalar_lea.sflag [#allocation3], %s193
        %s195 = sand.u32 %s48, 1
        %s196 = smul.addr %s195, 16
        %s197 = scalar_lea.vmem [#allocation2], %s196
        // Predicated region
        $region29: #{tpu_custom_call.1} parent=27 // pred_check
          %p198 = pneg %p61
        $region30: #{tpu_custom_call.1} parent=27 // pred_check_branch
          %200 = sbr.rel (%p198) target = $region32
        $region31: #{tpu_custom_call.1} parent=27 // pred_region
          %201 = dma.done %s194, 256
        $region32: #{tpu_custom_call.1} parent=27 // pred_fallthru
          _
        %s202 = sand.u32 %s80, 1
        %s203 = scalar_lea.sflag [#allocation6], %s202
        %s204 = sand.u32 %s80, 1
        %s205 = smul.addr %s204, 16
        %s206 = scalar_lea.vmem [#allocation5], %s205
        // Predicated region
        $region33: #{tpu_custom_call.1} parent=27 // pred_check
          %p207 = pneg %p93
        $region34: #{tpu_custom_call.1} parent=27 // pred_check_branch
          %209 = sbr.rel (%p207) target = $region36
        $region35: #{tpu_custom_call.1} parent=27 // pred_region
          %210 = dma.done %s203, 256
        $region36: #{tpu_custom_call.1} parent=27 // pred_fallthru
          _
        %s211 = sand.u32 %s48, 1
        %s212 = scalar_lea.sflag [#allocation3], %s211
        %s213 = sand.u32 %s48, 1
        %s214 = smul.addr %s213, 16
        %s215 = scalar_lea.vmem [#allocation2], %s214
        %p216 = pneg %p61
        %p217 = pneg %p58
        %s218 = sand.u32 %s80, 1
        %s219 = scalar_lea.sflag [#allocation6], %s218
        %s220 = sand.u32 %s80, 1
        %s221 = smul.addr %s220, 16
        %s222 = scalar_lea.vmem [#allocation5], %s221
        %p223 = pneg %p93
        %p224 = pneg %p90
        %p225 = pneg %p119
        %p226 = pneg %p116
        %s227 = sand.u32 %s106, 1
        %s228 = scalar_lea.sflag [#allocation4], %s227
        %s229 = sand.u32 %s106, 1
        %s230 = smul.addr %s229, 8
        %s231 = scalar_lea.vmem [#allocation7], %s230
        %s232 = sadd.s32 %s26, %s27
        %p233 = scmp.lt.s32.totalorder %s232, 0
        %s234 = scalar_select %p233, %s232, 0
        %s235 = smul.u32 2, %s234
        %s236 = sadd.s32 %s26, %s27
        %p237 = scmp.lt.s32.totalorder %s236, 0
        %s238 = scalar_select %p237, %s236, 0
        %s239 = smul.u32 2, %s238
        %p240 = scmp.eq.s32.totalorder %s27, 0
        // Predicated region
        $region37: #{tpu_custom_call.1} parent=27 // pred_check
          %p241 = pneg %p240
        $region38: #{tpu_custom_call.1} parent=27 // pred_check_branch
          %243 = sbr.rel (%p241) target = $region40
        $region39: #{tpu_custom_call.1} parent=27 // pred_region
          %244 = vst [vmem:[%s231] sm:$0xff] 0.0
        $region40: #{tpu_custom_call.1} parent=27 // pred_fallthru
          _
        %v245 = vld [vmem:[%s197] sm:$0xff]
        %v246 = vld [vmem:[%s197 + $0x8] sm:$0xff]
        %v247 = vld [vmem:[%s206] sm:$0xff]
        %v248 = vld [vmem:[%s206 + $0x8] sm:$0xff]
        %s249 = sadd.s32 %s26, %s27
        %s250 = smul.u32 %s249, 16
        %v251 = vlaneseq
        %v252 = vshrl.u32 %v251, 7
        %v253 = vadd.s32 %v252, 8
        %v254 = vstv %s250
        %v255 = vadd.s32 %v254, %v252
        %v256 = vadd.s32 %v254, %v253
        %vm257 = vcmp.lt.s32.totalorder %v255, 16
        %vm258 = vcmp.lt.s32.totalorder %v256, 16
        %v259 = vsel %vm257, %v245, 0.0
        %v260 = vsel %vm258, %v246, 0.0
        %v261 = vsel %vm257, %v247, 0.0
        %v262 = vsel %vm258, %v248, 0.0
        %v263 = vand.u32 2147483647, %v259
        %v264 = vand.u32 2147483647, %v260
        %v265 = vsub.f32 0.0, %v263
        %v266 = vsub.f32 0.0, %v264
        %v267 = vmul.f32 %v265, 1.442695
        %v268 = vpow.pop %v267
        %v269 = vmul.f32 %v266, 1.442695
        %v270 = vpow.pop %v269
        %v271 = vmax.f32 %v259, 0.0
        %v272 = vmax.f32 %v260, 0.0
        %v273 = vmul.f32 %v259, %v261
        %v274 = vmul.f32 %v260, %v262
        %v275 = vsub.f32 %v271, %v273
        %v276 = vsub.f32 %v272, %v274
        %v277 = vadd.f32 %v268, 1.0
        %v278 = vlog2.pop %v277
        %v279 = vmul.f32 %v278, 0.6931472
        %v280 = vmul.f32 -0.5, %v268
        %v281 = vadd.f32 %v280, 1.0
        %v282 = vmul.f32 %v281, %v268
        %v283 = vand.u32 2147483647, %v268
        %vm284 = vcmp.lt.f32.partialorder %v283, 0.0004427343
        %v285 = vsel %vm284, %v282, %v279
        %v286 = vadd.f32 %v270, 1.0
        %v287 = vlog2.pop %v286
        %v288 = vmul.f32 %v287, 0.6931472
        %v289 = vmul.f32 -0.5, %v270
        %v290 = vadd.f32 %v289, 1.0
        %v291 = vmul.f32 %v290, %v270
        %v292 = vand.u32 2147483647, %v270
        %vm293 = vcmp.lt.f32.partialorder %v292, 0.0004427343
        %v294 = vsel %vm293, %v291, %v288
        %v295 = vadd.f32 %v275, %v285
        %v296 = vadd.f32 %v276, %v294
        %vm297 = vcmp.ge.f32.partialorder %v259, 0.0
        %vm298 = vcmp.ge.f32.partialorder %v260, 0.0
        %v299 = vsel %vm297, 1.0, %v268
        %v300 = vsel %vm298, 1.0, %v270
        %v301 = vadd.f32 %v268, 1.0
        %v302 = vadd.f32 %v270, 1.0
        %v303 = vrcp.pop %v301
        %v304 = vmul.f32 %v299, %v303
        %v305 = vrcp.pop %v302
        %v306 = vmul.f32 %v300, %v305
        %v307 = vmul.f32 %v261, 0.25
        %v308 = vmul.f32 %v262, 0.25
        %v309 = vsub.f32 1.0, %v261
        %v310 = vsub.f32 1.0, %v262
        %v311 = vmul.f32 %v309, 0.75
        %v312 = vmul.f32 %v310, 0.75
        %v313 = vadd.f32 %v307, %v311
        %v314 = vadd.f32 %v308, %v312
        %v315 = vsub.f32 %v261, %v304
        %v316 = vsub.f32 %v262, %v306
        %v317 = vand.u32 2147483647, %v315
        %v318 = vand.u32 2147483647, %v316
        %v319 = vrsqrt.pop %v317
        %v320 = vmul.f32 %v317, %v319
        %vm321 = vcmp.eq.f32.partialorder %v317, inf
        %v322 = vsel %vm321, %v317, %v320
        %vm323 = vcmp.eq.f32.partialorder %v317, 0.0
        %v324 = vand.u32 %v317, 2147483648
        %v325 = vsel %vm323, %v324, %v322
        %v326 = vrsqrt.pop %v318
        %v327 = vmul.f32 %v318, %v326
        %vm328 = vcmp.eq.f32.partialorder %v318, inf
        %v329 = vsel %vm328, %v318, %v327
        %vm330 = vcmp.eq.f32.partialorder %v318, 0.0
        %v331 = vand.u32 %v318, 2147483648
        %v332 = vsel %vm330, %v331, %v329
        %v333 = vmul.f32 %v317, %v325
        %v334 = vmul.f32 %v318, %v332
        %v335 = vmul.f32 %v295, %v313
        %v336 = vmul.f32 %v296, %v314
        %v337 = vmul.f32 %v335, %v333
        %v338 = vmul.f32 %v336, %v334
        %v339 = vsel %vm257, %v337, 0.0
        %v340 = vsel %vm258, %v338, 0.0
        %v341 = vld [vmem:[%s231] sm:$0xff]
        %v342 = vadd.f32 %v339, %v340
        %v343 = vadd.f32 %v341, %v342
        %344 = vst [vmem:[%s231] sm:$0xff] %v343
        %s345 = sand.u32 %s106, 1
        %s346 = scalar_lea.sflag [#allocation4], %s345
        %s347 = sand.u32 %s106, 1
        %s348 = smul.addr %s347, 8
        %s349 = scalar_lea.vmem [#allocation7], %s348
        // Predicated region
        $region41: #{tpu_custom_call.1} parent=27 // pred_check
          %p350 = pneg %p116
        $region42: #{tpu_custom_call.1} parent=27 // pred_check_branch
          %352 = sbr.rel (%p350) target = $region44
        $region43: #{tpu_custom_call.1} parent=27 // pred_region
          %s354 = ssub.s32 128, 128
          %355 = vsyncadd %s346, %s354
          %s356 = smul.addr %s26, 128
          %s357 = scalar_lea.hbm %s2, %s356
          %s359 = sshll.u32 %s349, 4
          %s360 = int_to_ptr.vmem [resolvable:$true] %s359
          %362 = dma.vmem_to_hbm [thread:$0]  %s360, 128, %s357, %s346
        $region44: #{tpu_custom_call.1} parent=27 // pred_fallthru
          _
      $region28: #{tpu_custom_call.1} parent=5 // pred_fallthru
        _
      %p363 = scmp.le.s32.totalorder 2, %s17
      // Predicated region
      $region45: #{tpu_custom_call.1} parent=5 // pred_check
        %p364 = pneg %p363
      $region46: #{tpu_custom_call.1} parent=5 // pred_check_branch
        %366 = sbr.rel (%p364) target = $region48
      $region47: #{tpu_custom_call.1} parent=5 // pred_region
        %s367 = ssub.s32 %s17, 2
        // Predicated region
        $region49: #{tpu_custom_call.1} parent=47 // pred_check
          %p368 = pneg %p122
        $region50: #{tpu_custom_call.1} parent=47 // pred_check_branch
          %370 = sbr.rel (%p368) target = $region52
        $region51: #{tpu_custom_call.1} parent=47 // pred_region
          %s371 = sand.u32 %s107, 1
          %s372 = scalar_lea.sflag [#allocation4], %s371
          %s373 = sand.u32 %s107, 1
          %s374 = smul.addr %s373, 8
          %s375 = scalar_lea.vmem [#allocation7], %s374
          %376 = dma.done %s372, 128
        $region52: #{tpu_custom_call.1} parent=47 // pred_fallthru
          _
      $region48: #{tpu_custom_call.1} parent=5 // pred_fallthru
        _
    $region6: #{tpu_custom_call.1} parent=1 // loop_footer
      %s21 = sadd.s32 1, %s17
    $region7: #{tpu_custom_call.1} parent=1 // loop_footer_branch
      %16 = sbr.rel target = $region3
    $region8: #{tpu_custom_call.1} parent=1 // loop_exit
      _
    %377 = vsyncpa [#allocation3], 1
    %s378 = scalar_lea.sflag [#allocation3], 1
    %379 = vsyncpa %s378, 1
    %380 = vsyncpa [#allocation6], 1
    %s381 = scalar_lea.sflag [#allocation6], 1
    %382 = vsyncpa %s381, 1
    %383 = vsyncpa [#allocation4], 1
    %s384 = scalar_lea.sflag [#allocation4], 1
    %385 = vsyncpa %s384, 1

</llo_original>
